<compile_context>
chip_gen: v7x
topology: tpu7x:2x2x1
jax: 0.10.0
libtpu: 0.0.40
codegen_flags: <defaults>
</compile_context>

<pallas_src>
import numpy as np
import jax
import jax.numpy as jnp
from jax.experimental import pallas as pl
from jax.experimental.pallas import tpu as pltpu

_SUB = 16  # sublane granularity for row tiles (valid for both f32 and bf16 blocks)


def _round_up(a, b):
    return ((a + b - 1) // b) * b


def _fused_gather_mlp_kernel(idx_ref, z_ref, w1_ref, b1_ref, w2_ref, b2_ref, o_ref):
    """Gather(3 rows of z) + sum + [Linear w/ BN folded] + ReLU + Linear for one row tile."""
    idx = idx_ref[...]                    # (tm, 3) int32 flat row ids into z_flat
    tm = idx.shape[0]
    n_rows = z_ref.shape[0]
    # Gather + 3-way sum fused as a one-hot-counts matmul:
    #   onehot[k, r] = #{t in {0,1,2} : idx[k, t] == r},   x = onehot @ z
    # x never touches HBM; the extra MXU work is free slack in this mem-bound regime.
    pos = jax.lax.broadcasted_iota(jnp.int32, (tm, n_rows), 1)
    onehot = ((idx[:, 0:1] == pos).astype(jnp.float32)
              + (idx[:, 1:2] == pos).astype(jnp.float32)
              + (idx[:, 2:3] == pos).astype(jnp.float32))
    x = jnp.dot(onehot, z_ref[...], preferred_element_type=jnp.float32)
    # Linear1 with BatchNorm (running stats) folded in, then ReLU.
    h = jnp.dot(x, w1_ref[...], preferred_element_type=jnp.float32) + b1_ref[...]
    h = jnp.maximum(h, 0.0)
    # TODO(synk): Dropout(p=0.1) is identity at inference time; not applied here.
    # Linear2; output block uses the true d_output width -> only real bytes stored.
    o_ref[...] = (jnp.dot(h, w2_ref[...], preferred_element_type=jnp.float32)
                  + b2_ref[...]).astype(o_ref.dtype)


def _mlp_kernel(x_ref, w1_ref, b1_ref, w2_ref, b2_ref, o_ref):
    """Fallback (very large z): x was gathered/summed by XLA outside and arrives as bf16."""
    x = x_ref[...].astype(jnp.float32)
    h = jnp.dot(x, w1_ref[...], preferred_element_type=jnp.float32) + b1_ref[...]
    h = jnp.maximum(h, 0.0)
    o_ref[...] = (jnp.dot(h, w2_ref[...], preferred_element_type=jnp.float32)
                  + b2_ref[...]).astype(o_ref.dtype)


def init_params(key, d_atom, d_hid, d_output):
    """Raw parameters matching torch defaults: Linear, BatchNorm1d (eval), Linear."""
    k1, k2, k3, k4 = jax.random.split(key, 4)
    lim1 = 1.0 / np.sqrt(d_atom)
    lim2 = 1.0 / np.sqrt(d_hid)
    w1 = jax.random.uniform(k1, (d_atom, d_hid), jnp.float32, -lim1, lim1)
    b1 = jax.random.uniform(k2, (1, d_hid), jnp.float32, -lim1, lim1)
    w2 = jax.random.uniform(k3, (d_hid, d_output), jnp.float32, -lim2, lim2)
    b2 = jax.random.uniform(k4, (1, d_output), jnp.float32, -lim2, lim2)
    return dict(
        w1=w1, b1=b1, w2=w2, b2=b2, eps=1e-5,
        gamma=jnp.ones((1, d_hid), jnp.float32),
        beta=jnp.zeros((1, d_hid), jnp.float32),
        running_mean=jnp.zeros((1, d_hid), jnp.float32),
        running_var=jnp.ones((1, d_hid), jnp.float32),
    )


def fold_params(p):
    """Fold BatchNorm1d (eval / running stats) into Linear1; keep Linear2 unpadded."""
    scale = p["gamma"] / jnp.sqrt(p["running_var"] + p["eps"])   # (1, d_hid)
    shift = p["beta"] - p["running_mean"] * scale                # (1, d_hid)
    w1f = (p["w1"] * scale).astype(jnp.float32)
    b1f = (p["b1"] * scale + shift).astype(jnp.float32)
    # TODO(synk): for production-sized d_atom/d_hid, cast w1f/w2 (and x) to bf16 and keep
    # f32 accumulation in-kernel to halve weight/x bytes on the v6e/v7x 256-wide MXUs.
    return w1f, b1f, p["w2"].astype(jnp.float32), p["b2"].astype(jnp.float32)


def atom_angle_projection(z, angel_atom_table, folded_params, *, tm=1024, fuse_gather=None):
    """z: (B, N, d_atom) f32; angel_atom_table: (B, M, 3) int32, -1 in col 0 => invalid row."""
    B, N, d_atom = z.shape
    _, M, _ = angel_atom_table.shape
    w1f, b1f, w2f, b2f = folded_params
    d_out = w2f.shape[1]
    n_rows = B * N

    # ---- device-side torch.nonzero equivalent (no full-table host round-trip) --------
    valid = (angel_atom_table[:, :, 0] != -1).reshape(-1)                 # (B*M,)
    # Stable ascending sort of (invalid=1, valid=0) keys => valid rows first, in the same
    # row-major order torch.nonzero produces.
    order = jnp.argsort(jnp.where(valid, 0, 1).astype(jnp.int32))
    tab_sorted = jnp.take(angel_atom_table.reshape(B * M, 3), order, axis=0)
    ii = (order // M).astype(jnp.int32)
    flat_idx = jnp.clip(ii[:, None] * N + tab_sorted, 0, n_rows - 1).astype(jnp.int32)
    # Single scalar sync to size the grid / output (vs. pulling + nonzero'ing the table).
    K = int(jnp.sum(valid))
    if K == 0:
        return jnp.zeros((0, d_out), jnp.float32)

    # ---- row tiling: big tiles for large K, but always >= 2 grid steps (v7x megacore) -
    tm_eff = int(min(tm, max(_SUB, _round_up(-(-K // 2), _SUB))))
    k_pad = _round_up(K, tm_eff)
    if k_pad // tm_eff < 2:
        k_pad = 2 * tm_eff
    n_steps = k_pad // tm_eff

    if k_pad <= flat_idx.shape[0]:
        idx_pad = flat_idx[:k_pad]
    else:
        idx_pad = jnp.pad(flat_idx, ((0, k_pad - flat_idx.shape[0]), (0, 0)))

    if fuse_gather is None:
        # Fused path keeps z VMEM-resident and builds a (tm_eff, B*N) one-hot per tile;
        # keep the footprint far below the smallest scoped-VMEM budget (v7x: 32 MiB).
        fuse_gather = (tm_eff * n_rows * 4 + n_rows * d_atom * 4) <= (8 << 20)

    const2d = lambda i: (0, 0)     # hoisted (fetched once, never re-DMA'd)
    row_map = lambda i: (i, 0)
    out_spec = pl.BlockSpec((tm_eff, d_out), row_map)     # true width -> no padded-zero writeback
    weight_specs = [pl.BlockSpec(w1f.shape, const2d), pl.BlockSpec(b1f.shape, const2d),
                    pl.BlockSpec(w2f.shape, const2d), pl.BlockSpec(b2f.shape, const2d)]
    cparams = pltpu.CompilerParams(dimension_semantics=("parallel",))

    if fuse_gather:
        z_flat = z.reshape(n_rows, d_atom).astype(jnp.float32)
        out = pl.pallas_call(
            _fused_gather_mlp_kernel,
            out_shape=jax.ShapeDtypeStruct((k_pad, d_out), jnp.float32),
            grid_spec=pltpu.PrefetchScalarGridSpec(
                num_scalar_prefetch=0,
                grid=(n_steps,),
                in_specs=[pl.BlockSpec((tm_eff, 3), row_map),
                          pl.BlockSpec((n_rows, d_atom), const2d)] + weight_specs,
                out_specs=out_spec,
            ),
            compiler_params=cparams,
        )(idx_pad, z_flat, w1f, b1f, w2f, b2f)
    else:
        # Large-z fallback: gather/sum in XLA, but emit bf16 x to halve the round-trip bytes.
        # TODO(synk): for z far beyond VMEM a manual make_async_copy row-DMA gather
        # (memory_space=pl.ANY + scalar-prefetched indices) would avoid this XLA gather.
        z_flat = z.reshape(n_rows, d_atom)
        x = (jnp.take(z_flat, idx_pad[:, 0], axis=0)
             + jnp.take(z_flat, idx_pad[:, 1], axis=0)
             + jnp.take(z_flat, idx_pad[:, 2], axis=0)).astype(jnp.bfloat16)
        out = pl.pallas_call(
            _mlp_kernel,
            out_shape=jax.ShapeDtypeStruct((k_pad, d_out), jnp.float32),
            grid_spec=pltpu.PrefetchScalarGridSpec(
                num_scalar_prefetch=0,
                grid=(n_steps,),
                in_specs=[pl.BlockSpec((tm_eff, d_atom), row_map)] + weight_specs,
                out_specs=out_spec,
            ),
            compiler_params=cparams,
        )(x, w1f, b1f, w2f, b2f)

    return out[:K]


def reference(z, angel_atom_table, p):
    z_np = np.asarray(z)
    tab = np.asarray(angel_atom_table)
    valid = tab[:, :, 0] != -1
    ii, jj = np.nonzero(valid)
    x = (z_np[ii, tab[ii, jj, 0]] + z_np[ii, tab[ii, jj, 1]]
         + z_np[ii, tab[ii, jj, 2]]).astype(np.float32)
    w1, b1 = np.asarray(p["w1"]), np.asarray(p["b1"])
    w2, b2 = np.asarray(p["w2"]), np.asarray(p["b2"])
    scale = np.asarray(p["gamma"]) / np.sqrt(np.asarray(p["running_var"]) + p["eps"])
    shift = np.asarray(p["beta"]) - np.asarray(p["running_mean"]) * scale
    h = x @ w1 + b1
    h = h * scale + shift
    h = np.maximum(h, 0.0)
    return h @ w2 + b2


if __name__ == "__main__":
    B, N, M = 2, 16, 8
    d_atom, d_hid, d_output = 32, 64, 16

    key = jax.random.PRNGKey(0)
    kz, kt, kp = jax.random.split(key, 3)

    z = jax.random.normal(kz, (B, N, d_atom), jnp.float32)

    # Angle-atom table: triples of atom indices; invalidate some entries with -1.
    table = np.array(jax.random.randint(kt, (B, M, 3), 0, N, dtype=jnp.int32))
    table[0, 5:, 0] = -1
    table[1, 3:, 0] = -1
    table = jnp.asarray(table, jnp.int32)

    params = init_params(kp, d_atom, d_hid, d_output)
    folded = fold_params(params)

    ref = reference(z, table, params)

    # Fused-gather path (default for small/medium z): gather + sum run inside the kernel.
    out_fused = jax.block_until_ready(atom_angle_projection(z, table, folded, fuse_gather=True))
    assert out_fused.shape == ref.shape, (out_fused.shape, ref.shape)
    np.testing.assert_allclose(np.asarray(out_fused), ref, rtol=1e-4, atol=1e-4)

    # Large-z fallback path (XLA gather outside, bf16 x into the kernel) — looser tolerance
    # because x is rounded to bf16 before the kernel.
    out_split = jax.block_until_ready(atom_angle_projection(z, table, folded, fuse_gather=False))
    assert out_split.shape == ref.shape, (out_split.shape, ref.shape)
    np.testing.assert_allclose(np.asarray(out_split), ref, rtol=2e-2, atol=2e-2)

    print("KERNEL_OK")
</pallas_src>

<mosaic_0001>
module attributes {stable_mosaic.version = 11 : i64} {
  func.func @_fused_gather_mlp_kernel(%arg0: i32, %arg1: memref<16x3xi32, #tpu.memory_space<vmem>>, %arg2: memref<32x32xf32, #tpu.memory_space<vmem>>, %arg3: memref<32x64xf32, #tpu.memory_space<vmem>>, %arg4: memref<1x64xf32, #tpu.memory_space<vmem>>, %arg5: memref<64x16xf32, #tpu.memory_space<vmem>>, %arg6: memref<1x16xf32, #tpu.memory_space<vmem>>, %arg7: memref<16x16xf32, #tpu.memory_space<vmem>>) attributes {dimension_semantics = [#tpu.dimension_semantics<parallel>], iteration_bounds = array<i64: 2>, scalar_prefetch = 0 : i64, scratch_operands = 0 : i64, tpu.core_type = #tpu.core_type<tc>, window_params = [{transform_indices = @transform_0, window_bounds = array<i64: 16, 3>}, {pipeline_mode = #tpu.pipeline_mode<synchronous>, transform_indices = @transform_1, window_bounds = array<i64: 32, 32>}, {pipeline_mode = #tpu.pipeline_mode<synchronous>, transform_indices = @transform_2, window_bounds = array<i64: 32, 64>}, {pipeline_mode = #tpu.pipeline_mode<synchronous>, transform_indices = @transform_3, window_bounds = array<i64: 1, 64>}, {pipeline_mode = #tpu.pipeline_mode<synchronous>, transform_indices = @transform_4, window_bounds = array<i64: 64, 16>}, {pipeline_mode = #tpu.pipeline_mode<synchronous>, transform_indices = @transform_5, window_bounds = array<i64: 1, 16>}, {transform_indices = @transform_6, window_bounds = array<i64: 16, 16>}]} {
    %c0 = arith.constant 0 : index
    %c0_0 = arith.constant 0 : index
    %0 = vector.load %arg1[%c0, %c0_0] : memref<16x3xi32, #tpu.memory_space<vmem>>, vector<16x3xi32>
    %1 = tpu.iota {dimensions = array<i32: 1>} : vector<16x32xi32>
    %2 = vector.extract_strided_slice %0 {offsets = [0, 0], sizes = [16, 1], strides = [1, 1]} : vector<16x3xi32> to vector<16x1xi32>
    %3 = vector.broadcast %2 : vector<16x1xi32> to vector<16x32xi32>
    %4 = arith.cmpi eq, %3, %1 : vector<16x32xi32>
    %5 = arith.extui %4 : vector<16x32xi1> to vector<16x32xi32>
    %6 = arith.sitofp %5 : vector<16x32xi32> to vector<16x32xf32>
    %7 = vector.extract_strided_slice %0 {offsets = [0, 1], sizes = [16, 1], strides = [1, 1]} : vector<16x3xi32> to vector<16x1xi32>
    %8 = vector.broadcast %7 : vector<16x1xi32> to vector<16x32xi32>
    %9 = arith.cmpi eq, %8, %1 : vector<16x32xi32>
    %10 = arith.extui %9 : vector<16x32xi1> to vector<16x32xi32>
    %11 = arith.sitofp %10 : vector<16x32xi32> to vector<16x32xf32>
    %12 = arith.addf %6, %11 : vector<16x32xf32>
    %13 = vector.extract_strided_slice %0 {offsets = [0, 2], sizes = [16, 1], strides = [1, 1]} : vector<16x3xi32> to vector<16x1xi32>
    %14 = vector.broadcast %13 : vector<16x1xi32> to vector<16x32xi32>
    %15 = arith.cmpi eq, %14, %1 : vector<16x32xi32>
    %16 = arith.extui %15 : vector<16x32xi1> to vector<16x32xi32>
    %17 = arith.sitofp %16 : vector<16x32xi32> to vector<16x32xf32>
    %18 = arith.addf %12, %17 : vector<16x32xf32>
    %c0_1 = arith.constant 0 : index
    %c0_2 = arith.constant 0 : index
    %19 = vector.load %arg2[%c0_1, %c0_2] : memref<32x32xf32, #tpu.memory_space<vmem>>, vector<32x32xf32>
    %cst = arith.constant dense<0.000000e+00> : vector<16x32xf32>
    %20 = tpu.matmul %18, %19, %cst {dimension_numbers = #tpu.dot_dimension_numbers<[1], [0], [0], [1], [0, 0, 1, 1], [], []>} : vector<16x32xf32>, vector<32x32xf32>, vector<16x32xf32> -> vector<16x32xf32>
    %c0_3 = arith.constant 0 : index
    %c0_4 = arith.constant 0 : index
    %21 = vector.load %arg3[%c0_3, %c0_4] : memref<32x64xf32, #tpu.memory_space<vmem>>, vector<32x64xf32>
    %cst_5 = arith.constant dense<0.000000e+00> : vector<16x64xf32>
    %22 = tpu.matmul %20, %21, %cst_5 {dimension_numbers = #tpu.dot_dimension_numbers<[1], [0], [0], [1], [0, 0, 1, 1], [], []>} : vector<16x32xf32>, vector<32x64xf32>, vector<16x64xf32> -> vector<16x64xf32>
    %c0_6 = arith.constant 0 : index
    %c0_7 = arith.constant 0 : index
    %23 = vector.load %arg4[%c0_6, %c0_7] : memref<1x64xf32, #tpu.memory_space<vmem>>, vector<1x64xf32>
    %24 = vector.broadcast %23 : vector<1x64xf32> to vector<16x64xf32>
    %25 = arith.addf %22, %24 : vector<16x64xf32>
    %cst_8 = arith.constant 0.000000e+00 : f32
    %26 = vector.broadcast %cst_8 : f32 to vector<16x64xf32>
    %27 = arith.maximumf %25, %26 : vector<16x64xf32>
    %c0_9 = arith.constant 0 : index
    %c0_10 = arith.constant 0 : index
    %28 = vector.load %arg5[%c0_9, %c0_10] : memref<64x16xf32, #tpu.memory_space<vmem>>, vector<64x16xf32>
    %cst_11 = arith.constant dense<0.000000e+00> : vector<16x16xf32>
    %29 = tpu.matmul %27, %28, %cst_11 {dimension_numbers = #tpu.dot_dimension_numbers<[1], [0], [0], [1], [0, 0, 1, 1], [], []>} : vector<16x64xf32>, vector<64x16xf32>, vector<16x16xf32> -> vector<16x16xf32>
    %c0_12 = arith.constant 0 : index
    %c0_13 = arith.constant 0 : index
    %30 = vector.load %arg6[%c0_12, %c0_13] : memref<1x16xf32, #tpu.memory_space<vmem>>, vector<1x16xf32>
    %31 = vector.broadcast %30 : vector<1x16xf32> to vector<16x16xf32>
    %32 = arith.addf %29, %31 : vector<16x16xf32>
    %c0_14 = arith.constant 0 : index
    %c0_15 = arith.constant 0 : index
    %33 = vector.load %arg7[%c0_14, %c0_15] : memref<16x16xf32, #tpu.memory_space<vmem>>, vector<16x16xf32>
    tpu.vector_store %arg7[%c0_14, %c0_15], %32 {strides = array<i32>} : memref<16x16xf32, #tpu.memory_space<vmem>>, vector<16x16xf32>,
    return
  }
  func.func @transform_0(%arg0: i32) -> (i32, i32) {
    %c0_i32 = arith.constant 0 : i32
    %c0_i32_0 = arith.constant 0 : i32
    return %arg0, %c0_i32 : i32, i32
  }
  func.func @transform_1(%arg0: i32) -> (i32, i32) {
    %c0_i32 = arith.constant 0 : i32
    %c0_i32_0 = arith.constant 0 : i32
    %c0_i32_1 = arith.constant 0 : i32
    return %c0_i32, %c0_i32_0 : i32, i32
  }
  func.func @transform_2(%arg0: i32) -> (i32, i32) {
    %c0_i32 = arith.constant 0 : i32
    %c0_i32_0 = arith.constant 0 : i32
    %c0_i32_1 = arith.constant 0 : i32
    return %c0_i32, %c0_i32_0 : i32, i32
  }
  func.func @transform_3(%arg0: i32) -> (i32, i32) {
    %c0_i32 = arith.constant 0 : i32
    %c0_i32_0 = arith.constant 0 : i32
    %c0_i32_1 = arith.constant 0 : i32
    return %c0_i32, %c0_i32_0 : i32, i32
  }
  func.func @transform_4(%arg0: i32) -> (i32, i32) {
    %c0_i32 = arith.constant 0 : i32
    %c0_i32_0 = arith.constant 0 : i32
    %c0_i32_1 = arith.constant 0 : i32
    return %c0_i32, %c0_i32_0 : i32, i32
  }
  func.func @transform_5(%arg0: i32) -> (i32, i32) {
    %c0_i32 = arith.constant 0 : i32
    %c0_i32_0 = arith.constant 0 : i32
    %c0_i32_1 = arith.constant 0 : i32
    return %c0_i32, %c0_i32_0 : i32, i32
  }
  func.func @transform_6(%arg0: i32) -> (i32, i32) {
    %c0_i32 = arith.constant 0 : i32
    %c0_i32_0 = arith.constant 0 : i32
    return %arg0, %c0_i32 : i32, i32
  }
}

</mosaic_0001>

<llo_original>
// kernel: tpu_custom_call.1
$region0: #{tpu_custom_call.1}
  #allocation0 [shape = 'u32[]', space=smem, size = 0x4, offset = 0x4, fixed_abs, tag = 'smem constant byte address 0x4 - core index']
  #allocation1 [shape = 'u32[144,128]{1,0:T(1,128)}', space=vmem, size = 0x12000, scoped, tag = 'internal scratch']
  %s0 = inlined_call_operand.vmem [shape: s32[32,3], index: 0, kind: input, shape index: {}]
  %s1 = inlined_call_operand.vmem [shape: f32[32,32], index: 1, kind: input, shape index: {}]
  %s2 = inlined_call_operand.vmem [shape: f32[32,64], index: 2, kind: input, shape index: {}]
  %s3 = inlined_call_operand.vmem [shape: f32[1,64], index: 3, kind: input, shape index: {}]
  %s4 = inlined_call_operand.vmem [shape: f32[64,16], index: 4, kind: input, shape index: {}]
  %s5 = inlined_call_operand.vmem [shape: f32[1,16], index: 5, kind: input, shape index: {}]
  %s6 = inlined_call_operand.vmem [shape: f32[32,16], index: 6, kind: output, shape index: {}]
  %s7 = sld [smem:[#allocation0]]
  $region57: #{tpu_custom_call.1} parent=0
    _
  %s9 = ssub.s32 1, %s7
  %s10 = scalar_select 0, %s9, %s7
  loop: start=0, step=1, limit=4
  $region2: #{tpu_custom_call.1} parent=0 // loop_pre_header
    _
  $region3: #{tpu_custom_call.1} parent=0 // loop_header
    %s12 = sphi 0, %s16
    %p13 = scmp.ge.s32.totalorder %s12, 4
    %s22 = sphi 0, %s24
    %s25 = sphi 0, %s22
    %s26 = sphi 0, %s25
    %s42 = sphi 0, %s26
    %s46 = sphi 0, %s46
    %s48 = sphi 0, %s46
    %s49 = sphi 0, %s48
    %s63 = sphi 0, %s49
    %s67 = sphi 0, %s67
    %s69 = sphi 0, %s67
    %s70 = sphi 0, %s69
    %s84 = sphi 0, %s70
    %s88 = sphi 0, %s88
    %s90 = sphi 0, %s88
    %s91 = sphi 0, %s90
    %s105 = sphi 0, %s91
    %s109 = sphi 0, %s109
    %s111 = sphi 0, %s109
    %s112 = sphi 0, %s111
    %s126 = sphi 0, %s112
    %s130 = sphi 0, %s130
    %s132 = sphi 0, %s130
    %s133 = sphi 0, %s132
    %s147 = sphi 0, %s133
    %s153 = sphi 0, %s155
    %s156 = sphi 0, %s153
    %s157 = sphi 0, %s156
    %s173 = sphi 0, %s157
  $region4: #{tpu_custom_call.1} parent=0 // loop_header_branch
    %15 = sbr.rel (%p13) target = $region8
  $region5: #{tpu_custom_call.1} parent=0 // loop_body
    %s17 = ssub.s32 %s12, 1
    %s18 = ssub.s32 %s12, 2
    %s19 = sadd.s32 %s12, 1
    %s20 = ssub.s32 %s12, %s19
    %p21 = scmp.eq.s32.totalorder %s20, 0
    %s23 = sadd.s32 %s22, 1
    %s24 = scalar_select %p21, %s22, %s23
    %p27 = pneg %p21
    %p28 = scmp.eq.s32.totalorder %s12, 1
    %p29 = por %p27, %p28
    %p30 = scmp.ne.s32.totalorder %s22, %s25
    %p31 = scmp.eq.s32.totalorder %s12, 0
    %p32 = por %p30, %p31
    %p33 = scmp.ne.s32.totalorder %s22, %s25
    %p34 = scmp.eq.s32.totalorder %s17, 1
    %p35 = por %p33, %p34
    %p36 = scmp.ne.s32.totalorder %s25, %s26
    %p37 = scmp.eq.s32.totalorder %s17, 0
    %p38 = por %p36, %p37
    %p39 = scmp.ne.s32.totalorder %s25, %s26
    %p40 = scmp.eq.s32.totalorder %s18, 1
    %p41 = por %p39, %p40
    %p43 = scmp.ne.s32.totalorder %s26, %s42
    %p44 = scmp.eq.s32.totalorder %s18, 0
    %p45 = por %p43, %p44
    %s47 = sadd.s32 %s46, 1
    %p50 = scmp.eq.s32.totalorder %s12, 1
    %p51 = scmp.ne.s32.totalorder %s46, %s48
    %p52 = scmp.eq.s32.totalorder %s12, 0
    %p53 = por %p51, %p52
    %p54 = scmp.ne.s32.totalorder %s46, %s48
    %p55 = scmp.eq.s32.totalorder %s17, 1
    %p56 = por %p54, %p55
    %p57 = scmp.ne.s32.totalorder %s48, %s49
    %p58 = scmp.eq.s32.totalorder %s17, 0
    %p59 = por %p57, %p58
    %p60 = scmp.ne.s32.totalorder %s48, %s49
    %p61 = scmp.eq.s32.totalorder %s18, 1
    %p62 = por %p60, %p61
    %p64 = scmp.ne.s32.totalorder %s49, %s63
    %p65 = scmp.eq.s32.totalorder %s18, 0
    %p66 = por %p64, %p65
    %s68 = sadd.s32 %s67, 1
    %p71 = scmp.eq.s32.totalorder %s12, 1
    %p72 = scmp.ne.s32.totalorder %s67, %s69
    %p73 = scmp.eq.s32.totalorder %s12, 0
    %p74 = por %p72, %p73
    %p75 = scmp.ne.s32.totalorder %s67, %s69
    %p76 = scmp.eq.s32.totalorder %s17, 1
    %p77 = por %p75, %p76
    %p78 = scmp.ne.s32.totalorder %s69, %s70
    %p79 = scmp.eq.s32.totalorder %s17, 0
    %p80 = por %p78, %p79
    %p81 = scmp.ne.s32.totalorder %s69, %s70
    %p82 = scmp.eq.s32.totalorder %s18, 1
    %p83 = por %p81, %p82
    %p85 = scmp.ne.s32.totalorder %s70, %s84
    %p86 = scmp.eq.s32.totalorder %s18, 0
    %p87 = por %p85, %p86
    %s89 = sadd.s32 %s88, 1
    %p92 = scmp.eq.s32.totalorder %s12, 1
    %p93 = scmp.ne.s32.totalorder %s88, %s90
    %p94 = scmp.eq.s32.totalorder %s12, 0
    %p95 = por %p93, %p94
    %p96 = scmp.ne.s32.totalorder %s88, %s90
    %p97 = scmp.eq.s32.totalorder %s17, 1
    %p98 = por %p96, %p97
    %p99 = scmp.ne.s32.totalorder %s90, %s91
    %p100 = scmp.eq.s32.totalorder %s17, 0
    %p101 = por %p99, %p100
    %p102 = scmp.ne.s32.totalorder %s90, %s91
    %p103 = scmp.eq.s32.totalorder %s18, 1
    %p104 = por %p102, %p103
    %p106 = scmp.ne.s32.totalorder %s91, %s105
    %p107 = scmp.eq.s32.totalorder %s18, 0
    %p108 = por %p106, %p107
    %s110 = sadd.s32 %s109, 1
    %p113 = scmp.eq.s32.totalorder %s12, 1
    %p114 = scmp.ne.s32.totalorder %s109, %s111
    %p115 = scmp.eq.s32.totalorder %s12, 0
    %p116 = por %p114, %p115
    %p117 = scmp.ne.s32.totalorder %s109, %s111
    %p118 = scmp.eq.s32.totalorder %s17, 1
    %p119 = por %p117, %p118
    %p120 = scmp.ne.s32.totalorder %s111, %s112
    %p121 = scmp.eq.s32.totalorder %s17, 0
    %p122 = por %p120, %p121
    %p123 = scmp.ne.s32.totalorder %s111, %s112
    %p124 = scmp.eq.s32.totalorder %s18, 1
    %p125 = por %p123, %p124
    %p127 = scmp.ne.s32.totalorder %s112, %s126
    %p128 = scmp.eq.s32.totalorder %s18, 0
    %p129 = por %p127, %p128
    %s131 = sadd.s32 %s130, 1
    %p134 = scmp.eq.s32.totalorder %s12, 1
    %p135 = scmp.ne.s32.totalorder %s130, %s132
    %p136 = scmp.eq.s32.totalorder %s12, 0
    %p137 = por %p135, %p136
    %p138 = scmp.ne.s32.totalorder %s130, %s132
    %p139 = scmp.eq.s32.totalorder %s17, 1
    %p140 = por %p138, %p139
    %p141 = scmp.ne.s32.totalorder %s132, %s133
    %p142 = scmp.eq.s32.totalorder %s17, 0
    %p143 = por %p141, %p142
    %p144 = scmp.ne.s32.totalorder %s132, %s133
    %p145 = scmp.eq.s32.totalorder %s18, 1
    %p146 = por %p144, %p145
    %p148 = scmp.ne.s32.totalorder %s133, %s147
    %p149 = scmp.eq.s32.totalorder %s18, 0
    %p150 = por %p148, %p149
    %s151 = ssub.s32 %s12, %s19
    %p152 = scmp.eq.s32.totalorder %s151, 0
    %s154 = sadd.s32 %s153, 1
    %s155 = scalar_select %p152, %s153, %s154
    %p158 = pneg %p152
    %p159 = scmp.eq.s32.totalorder %s12, 1
    %p160 = por %p158, %p159
    %p161 = scmp.ne.s32.totalorder %s153, %s156
    %p162 = scmp.eq.s32.totalorder %s12, 0
    %p163 = por %p161, %p162
    %p164 = scmp.ne.s32.totalorder %s153, %s156
    %p165 = scmp.eq.s32.totalorder %s17, 1
    %p166 = por %p164, %p165
    %p167 = scmp.ne.s32.totalorder %s156, %s157
    %p168 = scmp.eq.s32.totalorder %s17, 0
    %p169 = por %p167, %p168
    %p170 = scmp.ne.s32.totalorder %s156, %s157
    %p171 = scmp.eq.s32.totalorder %s18, 1
    %p172 = por %p170, %p171
    %p174 = scmp.ne.s32.totalorder %s157, %s173
    %p175 = scmp.eq.s32.totalorder %s18, 0
    %p176 = por %p174, %p175
    %p177 = scmp.le.s32.totalorder 1, %s12
    %p178 = scmp.lt.s32.totalorder %s12, 3
    %p179 = pnand %p177, %p178
    %p180 = pneg %p179
    // Predicated region
    $region9: #{tpu_custom_call.1} parent=5 // pred_check
      _
    $region10: #{tpu_custom_call.1} parent=5 // pred_check_branch
      %182 = sbr.rel (%p179) target = $region12
    $region11: #{tpu_custom_call.1} parent=5 // pred_region
      %s183 = ssub.s32 %s12, 1
      // Predicated region
      $region13: #{tpu_custom_call.1} parent=11 // pred_check
        %p184 = pneg %p59
      $region14: #{tpu_custom_call.1} parent=11 // pred_check_branch
        %186 = sbr.rel (%p184) target = $region16
      $region15: #{tpu_custom_call.1} parent=11 // pred_region
        _
      $region16: #{tpu_custom_call.1} parent=11 // pred_fallthru
        _
      // Predicated region
      $region17: #{tpu_custom_call.1} parent=11 // pred_check
        %p187 = pneg %p80
      $region18: #{tpu_custom_call.1} parent=11 // pred_check_branch
        %189 = sbr.rel (%p187) target = $region20
      $region19: #{tpu_custom_call.1} parent=11 // pred_region
        _
      $region20: #{tpu_custom_call.1} parent=11 // pred_fallthru
        _
      // Predicated region
      $region21: #{tpu_custom_call.1} parent=11 // pred_check
        %p190 = pneg %p101
      $region22: #{tpu_custom_call.1} parent=11 // pred_check_branch
        %192 = sbr.rel (%p190) target = $region24
      $region23: #{tpu_custom_call.1} parent=11 // pred_region
        _
      $region24: #{tpu_custom_call.1} parent=11 // pred_fallthru
        _
      // Predicated region
      $region25: #{tpu_custom_call.1} parent=11 // pred_check
        %p193 = pneg %p122
      $region26: #{tpu_custom_call.1} parent=11 // pred_check_branch
        %195 = sbr.rel (%p193) target = $region28
      $region27: #{tpu_custom_call.1} parent=11 // pred_region
        _
      $region28: #{tpu_custom_call.1} parent=11 // pred_fallthru
        _
      // Predicated region
      $region29: #{tpu_custom_call.1} parent=11 // pred_check
        %p196 = pneg %p143
      $region30: #{tpu_custom_call.1} parent=11 // pred_check_branch
        %198 = sbr.rel (%p196) target = $region32
      $region31: #{tpu_custom_call.1} parent=11 // pred_region
        _
      $region32: #{tpu_custom_call.1} parent=11 // pred_fallthru
        _
    $region12: #{tpu_custom_call.1} parent=5 // pred_fallthru
      _
    %p199 = scmp.lt.s32.totalorder %s12, 2
    // Predicated region
    $region33: #{tpu_custom_call.1} parent=5 // pred_check
      %p200 = pneg %p199
    $region34: #{tpu_custom_call.1} parent=5 // pred_check_branch
      %202 = sbr.rel (%p200) target = $region36
    $region35: #{tpu_custom_call.1} parent=5 // pred_region
      // Predicated region
      $region37: #{tpu_custom_call.1} parent=35 // pred_check
        %p203 = pneg %p32
      $region38: #{tpu_custom_call.1} parent=35 // pred_check_branch
        %205 = sbr.rel (%p203) target = $region40
      $region39: #{tpu_custom_call.1} parent=35 // pred_region
        %s206 = smul.u32 2, %s12
        %p207 = scmp.lt.s32.totalorder %s206, 3
        %s208 = scalar_select %p207, %s206, 3
        %s209 = smul.addr %s208, 8
        %s210 = scalar_lea.vmem %s0, %s209
        %s211 = smul.u32 2, %s12
      $region40: #{tpu_custom_call.1} parent=35 // pred_fallthru
        _
    $region36: #{tpu_custom_call.1} parent=5 // pred_fallthru
      _
    %p212 = scmp.le.s32.totalorder 1, %s12
    %p213 = scmp.lt.s32.totalorder %s12, 3
    %p214 = pnand %p212, %p213
    %p215 = pneg %p214
    // Predicated region
    $region41: #{tpu_custom_call.1} parent=5 // pred_check
      _
    $region42: #{tpu_custom_call.1} parent=5 // pred_check_branch
      %217 = sbr.rel (%p214) target = $region44
    $region43: #{tpu_custom_call.1} parent=5 // pred_region
      %s218 = ssub.s32 %s12, 1
      %s219 = smul.u32 2, %s17
      %p220 = scmp.lt.s32.totalorder %s219, 3
      %s221 = scalar_select %p220, %s219, 3
      %s222 = smul.addr %s221, 8
      %s223 = scalar_lea.vmem %s0, %s222
      %p224 = pneg %p38
      %p225 = pneg %p35
      %p226 = pneg %p59
      %p227 = pneg %p56
      %p228 = pneg %p80
      %p229 = pneg %p77
      %p230 = pneg %p101
      %p231 = pneg %p98
      %p232 = pneg %p122
      %p233 = pneg %p119
      %p234 = pneg %p143
      %p235 = pneg %p140
      %p236 = pneg %p169
      %p237 = pneg %p166
      %s238 = smul.u32 2, %s17
      %p239 = scmp.lt.s32.totalorder %s238, 3
      %s240 = scalar_select %p239, %s238, 3
      %s241 = smul.addr %s240, 8
      %s242 = scalar_lea.vmem %s6, %s241
      %s243 = smul.u32 2, %s17
      %p244 = scmp.lt.s32.totalorder %s243, 3
      %s245 = scalar_select %p244, %s243, 3
      %s246 = smul.addr %s245, 8
      %s247 = scalar_lea.vmem %s0, %s246
      %s248 = smul.u32 2, %s17
      %s249 = smul.u32 2, %s17
      %p250 = scmp.lt.s32.totalorder %s249, 3
      %s251 = scalar_select %p250, %s249, 3
      %s252 = smul.addr %s251, 8
      %s253 = scalar_lea.vmem %s6, %s252
      %s254 = smul.u32 2, %s17
      %v255 = vld [vmem:[%s247] sm:$0xff]
      %v256 = vld [vmem:[%s247 + $0x8] sm:$0xff]
      %v257 = vlaneseq
      %v258 = vand.u32 %v257, 127
      %259 = vset.pattern.permute.xlu0 0
      %260 = vperm.xlu0 %259, %v255
      %v261 = vpop.permute.xlu0 %260
      %262 = vset.pattern.permute.xlu0 0
      %263 = vperm.xlu0 %262, %v256
      %v264 = vpop.permute.xlu0 %263
      %vm265 = vcmp.eq.s32.totalorder %v261, %v258
      %vm266 = vcmp.eq.s32.totalorder %v264, %v258
      %v267 = vsel %vm265, 1, 0
      %v268 = vsel %vm266, 1, 0
      %v269 = vcvt.s32.f32 %v267
      %v270 = vcvt.s32.f32 %v268
      %271 = vset.pattern.permute.xlu0 1
      %272 = vperm.xlu0 %271, %v255
      %v273 = vpop.permute.xlu0 %272
      %274 = vset.pattern.permute.xlu0 1
      %275 = vperm.xlu0 %274, %v256
      %v276 = vpop.permute.xlu0 %275
      %vm277 = vcmp.eq.s32.totalorder %v273, %v258
      %vm278 = vcmp.eq.s32.totalorder %v276, %v258
      %v279 = vsel %vm277, 1, 0
      %v280 = vsel %vm278, 1, 0
      %v281 = vcvt.s32.f32 %v279
      %v282 = vcvt.s32.f32 %v280
      %v283 = vadd.f32 %v269, %v281
      %v284 = vadd.f32 %v270, %v282
      %285 = vset.pattern.permute.xlu0 2
      %286 = vperm.xlu0 %285, %v255
      %v287 = vpop.permute.xlu0 %286
      %288 = vset.pattern.permute.xlu0 2
      %289 = vperm.xlu0 %288, %v256
      %v290 = vpop.permute.xlu0 %289
      %vm291 = vcmp.eq.s32.totalorder %v287, %v258
      %vm292 = vcmp.eq.s32.totalorder %v290, %v258
      %v293 = vsel %vm291, 1, 0
      %v294 = vsel %vm292, 1, 0
      %v295 = vcvt.s32.f32 %v293
      %v296 = vcvt.s32.f32 %v294
      %v297 = vadd.f32 %v283, %v295
      %v298 = vadd.f32 %v284, %v296
      %v299 = vld [vmem:[%s1] sm:$0xff]
      %v300 = vld [vmem:[%s1 + $0x8] sm:$0xff]
      %v301 = vld [vmem:[%s1 + $0x10] sm:$0xff]
      %v302 = vld [vmem:[%s1 + $0x18] sm:$0xff]
      %vm303 = vcmask 261120
      %v305 = vsel %vm303, %v297, 0
      %v308 = vsel %vm303, %v298, 0
      %310 = vmatprep.subr.mxu0 0.0
      %311 = vmatpush1.msra.mxu0 %v299
      %312 = vmatprep.subr.mxu0 0.0
      %313 = vmatpush1.msra.mxu0 %v300
      %314 = vmatprep.subr.mxu0 0.0
      %315 = vmatpush1.msra.mxu0 %v301
      %316 = vmatprep.subr.mxu0 0.0
      %317 = vmatpush1.msra.mxu0 %v302
      %318 = vmatprep.subr.mxu0 0.0
      %319 = vmatpush1.msra.mxu0 0.0
      %320 = vmatprep.subr.mxu0 0.0
      %321 = vmatpush1.msra.mxu0 0.0
      %322 = vmatprep.subr.mxu0 0.0
      %323 = vmatpush1.msra.mxu0 0.0
      %324 = vmatprep.subr.mxu0 0.0
      %325 = vmatpush1.msra.mxu0 0.0
      %326 = vmatprep.subr.mxu0 0.0
      %327 = vmatpush1.msra.mxu0 0.0
      %328 = vmatprep.subr.mxu0 0.0
      %329 = vmatpush1.msra.mxu0 0.0
      %330 = vmatprep.subr.mxu0 0.0
      %331 = vmatpush1.msra.mxu0 0.0
      %332 = vmatprep.subr.mxu0 0.0
      %333 = vmatpush1.msra.mxu0 0.0
      %334 = vmatprep.subr.mxu0 0.0
      %335 = vmatpush1.msra.mxu0 0.0
      %336 = vmatprep.subr.mxu0 0.0
      %337 = vmatpush1.msra.mxu0 0.0
      %338 = vmatprep.subr.mxu0 0.0
      %339 = vmatpush1.msra.mxu0 0.0
      %340 = vmatprep.subr.mxu0 0.0
      %341 = vmatpush1.msra.mxu0 0.0
      %342 = vmatprep.subr.mxu0 0.0
      %343 = vmatpush1.msra.mxu0 0.0
      %344 = vmatprep.subr.mxu0 0.0
      %345 = vmatpush1.msra.mxu0 0.0
      %346 = vmatprep.subr.mxu0 0.0
      %347 = vmatpush1.msra.mxu0 0.0
      %348 = vmatprep.subr.mxu0 0.0
      %349 = vmatpush1.msra.mxu0 0.0
      %350 = vmatprep.subr.mxu0 0.0
      %351 = vmatpush1.msra.mxu0 0.0
      %352 = vmatprep.subr.mxu0 0.0
      %353 = vmatpush1.msra.mxu0 0.0
      %354 = vmatprep.subr.mxu0 0.0
      %355 = vmatpush1.msra.mxu0 0.0
      %356 = vmatprep.subr.mxu0 0.0
      %357 = vmatpush1.msra.mxu0 0.0
      %358 = vmatprep.subr.mxu0 0.0
      %359 = vmatpush1.msra.mxu0 0.0
      %360 = vmatprep.subr.mxu0 0.0
      %361 = vmatpush1.msra.mxu0 0.0
      %362 = vmatprep.subr.mxu0 0.0
      %363 = vmatpush1.msra.mxu0 0.0
      %364 = vmatprep.subr.mxu0 0.0
      %365 = vmatpush1.msra.mxu0 0.0
      %366 = vmatprep.subr.mxu0 0.0
      %367 = vmatpush1.msra.mxu0 0.0
      %368 = vmatprep.subr.mxu0 0.0
      %369 = vmatpush1.msra.mxu0 0.0
      %370 = vmatprep.subr.mxu0 0.0
      %371 = vmatpush1.msra.mxu0 0.0
      %372 = vmatprep.subr.mxu0 0.0
      %373 = vmatpush1.msra.mxu0 0.0
      %374 = vmatprep.mubr.f32.mxu0 0.0
      %375 = vmatmul.mubr.f32.gmra.mrb[0].mxu0 %v305
      %v376 = vpop.f32.mrb[0].mxu0
      %v377 = vadd.f32 0.0, %v376
      %v378 = vpop.f32.mrb[0].mxu0
      %379 = vmatprep.mubr.f32.mxu0 0.0
      %380 = vmatmul.mubr.f32.gmra.mrb[0].mxu0 %v308
      %v381 = vpop.f32.mrb[0].mxu0
      %v382 = vadd.f32 0.0, %v381
      %v383 = vpop.f32.mrb[0].mxu0
      %384 = vdwg.mxu0
      %v385 = vld [vmem:[%s2] sm:$0xff]
      %v386 = vld [vmem:[%s2 + $0x8] sm:$0xff]
      %v387 = vld [vmem:[%s2 + $0x10] sm:$0xff]
      %v388 = vld [vmem:[%s2 + $0x18] sm:$0xff]
      %v389 = vld [vmem:[%s3] sm:$0x1]
      %v391 = vlaneseq
      %v392 = vshrl.u32 %v391, 7
      %v393 = vsub.s32 0, %v392
      %v394 = vrot.slane %v389, %v393
      %v397 = vsel %vm303, %v377, 0
      %v400 = vsel %vm303, %v382, 0
      %402 = vmatprep.subr.mxu0 0.0
      %403 = vmatpush1.msra.mxu0 %v385
      %404 = vmatprep.subr.mxu0 0.0
      %405 = vmatpush1.msra.mxu0 %v386
      %406 = vmatprep.subr.mxu0 0.0
      %407 = vmatpush1.msra.mxu0 %v387
      %408 = vmatprep.subr.mxu0 0.0
      %409 = vmatpush1.msra.mxu0 %v388
      %410 = vmatprep.subr.mxu0 0.0
      %411 = vmatpush1.msra.mxu0 0.0
      %412 = vmatprep.subr.mxu0 0.0
      %413 = vmatpush1.msra.mxu0 0.0
      %414 = vmatprep.subr.mxu0 0.0
      %415 = vmatpush1.msra.mxu0 0.0
      %416 = vmatprep.subr.mxu0 0.0
      %417 = vmatpush1.msra.mxu0 0.0
      %418 = vmatprep.subr.mxu0 0.0
      %419 = vmatpush1.msra.mxu0 0.0
      %420 = vmatprep.subr.mxu0 0.0
      %421 = vmatpush1.msra.mxu0 0.0
      %422 = vmatprep.subr.mxu0 0.0
      %423 = vmatpush1.msra.mxu0 0.0
      %424 = vmatprep.subr.mxu0 0.0
      %425 = vmatpush1.msra.mxu0 0.0
      %426 = vmatprep.subr.mxu0 0.0
      %427 = vmatpush1.msra.mxu0 0.0
      %428 = vmatprep.subr.mxu0 0.0
      %429 = vmatpush1.msra.mxu0 0.0
      %430 = vmatprep.subr.mxu0 0.0
      %431 = vmatpush1.msra.mxu0 0.0
      %432 = vmatprep.subr.mxu0 0.0
      %433 = vmatpush1.msra.mxu0 0.0
      %434 = vmatprep.subr.mxu0 0.0
      %435 = vmatpush1.msra.mxu0 0.0
      %436 = vmatprep.subr.mxu0 0.0
      %437 = vmatpush1.msra.mxu0 0.0
      %438 = vmatprep.subr.mxu0 0.0
      %439 = vmatpush1.msra.mxu0 0.0
      %440 = vmatprep.subr.mxu0 0.0
      %441 = vmatpush1.msra.mxu0 0.0
      %442 = vmatprep.subr.mxu0 0.0
      %443 = vmatpush1.msra.mxu0 0.0
      %444 = vmatprep.subr.mxu0 0.0
      %445 = vmatpush1.msra.mxu0 0.0
      %446 = vmatprep.subr.mxu0 0.0
      %447 = vmatpush1.msra.mxu0 0.0
      %448 = vmatprep.subr.mxu0 0.0
      %449 = vmatpush1.msra.mxu0 0.0
      %450 = vmatprep.subr.mxu0 0.0
      %451 = vmatpush1.msra.mxu0 0.0
      %452 = vmatprep.subr.mxu0 0.0
      %453 = vmatpush1.msra.mxu0 0.0
      %454 = vmatprep.subr.mxu0 0.0
      %455 = vmatpush1.msra.mxu0 0.0
      %456 = vmatprep.subr.mxu0 0.0
      %457 = vmatpush1.msra.mxu0 0.0
      %458 = vmatprep.subr.mxu0 0.0
      %459 = vmatpush1.msra.mxu0 0.0
      %460 = vmatprep.subr.mxu0 0.0
      %461 = vmatpush1.msra.mxu0 0.0
      %462 = vmatprep.subr.mxu0 0.0
      %463 = vmatpush1.msra.mxu0 0.0
      %464 = vmatprep.subr.mxu0 0.0
      %465 = vmatpush1.msra.mxu0 0.0
      %466 = vmatprep.mubr.f32.mxu0 0.0
      %467 = vmatmul.mubr.f32.gmra.mrb[0].mxu0 %v397
      %v468 = vpop.f32.mrb[0].mxu0
      %v469 = vadd.f32 %v394, %v468
      %v470 = vpop.f32.mrb[0].mxu0
      %471 = vmatprep.mubr.f32.mxu0 0.0
      %472 = vmatmul.mubr.f32.gmra.mrb[0].mxu0 %v400
      %v473 = vpop.f32.mrb[0].mxu0
      %v474 = vadd.f32 %v394, %v473
      %v475 = vpop.f32.mrb[0].mxu0
      %476 = vdwg.mxu0
      %v477 = vmax.f32 %v469, 0.0
      %v478 = vmax.f32 %v474, 0.0
      %v479 = vld [vmem:[%s4] sm:$0xff]
      %v480 = vld [vmem:[%s4 + $0x8] sm:$0xff]
      %v481 = vld [vmem:[%s4 + $0x10] sm:$0xff]
      %v482 = vld [vmem:[%s4 + $0x18] sm:$0xff]
      %v483 = vld [vmem:[%s4 + $0x20] sm:$0xff]
      %v484 = vld [vmem:[%s4 + $0x28] sm:$0xff]
      %v485 = vld [vmem:[%s4 + $0x30] sm:$0xff]
      %v486 = vld [vmem:[%s4 + $0x38] sm:$0xff]
      %v487 = vld [vmem:[%s5] sm:$0x1]
      %v489 = vlaneseq
      %v490 = vshrl.u32 %v489, 7
      %v491 = vsub.s32 0, %v490
      %v492 = vrot.slane %v487, %v491
      %vm494 = vcmask 523264
      %v496 = vsel %vm494, %v477, 0
      %v499 = vsel %vm494, %v478, 0
      %501 = vmatprep.subr.mxu0 0.0
      %502 = vmatpush1.msra.mxu0 %v479
      %503 = vmatprep.subr.mxu0 0.0
      %504 = vmatpush1.msra.mxu0 %v480
      %505 = vmatprep.subr.mxu0 0.0
      %506 = vmatpush1.msra.mxu0 %v481
      %507 = vmatprep.subr.mxu0 0.0
      %508 = vmatpush1.msra.mxu0 %v482
      %509 = vmatprep.subr.mxu0 0.0
      %510 = vmatpush1.msra.mxu0 %v483
      %511 = vmatprep.subr.mxu0 0.0
      %512 = vmatpush1.msra.mxu0 %v484
      %513 = vmatprep.subr.mxu0 0.0
      %514 = vmatpush1.msra.mxu0 %v485
      %515 = vmatprep.subr.mxu0 0.0
      %516 = vmatpush1.msra.mxu0 %v486
      %517 = vmatprep.subr.mxu0 0.0
      %518 = vmatpush1.msra.mxu0 0.0
      %519 = vmatprep.subr.mxu0 0.0
      %520 = vmatpush1.msra.mxu0 0.0
      %521 = vmatprep.subr.mxu0 0.0
      %522 = vmatpush1.msra.mxu0 0.0
      %523 = vmatprep.subr.mxu0 0.0
      %524 = vmatpush1.msra.mxu0 0.0
      %525 = vmatprep.subr.mxu0 0.0
      %526 = vmatpush1.msra.mxu0 0.0
      %527 = vmatprep.subr.mxu0 0.0
      %528 = vmatpush1.msra.mxu0 0.0
      %529 = vmatprep.subr.mxu0 0.0
      %530 = vmatpush1.msra.mxu0 0.0
      %531 = vmatprep.subr.mxu0 0.0
      %532 = vmatpush1.msra.mxu0 0.0
      %533 = vmatprep.subr.mxu0 0.0
      %534 = vmatpush1.msra.mxu0 0.0
      %535 = vmatprep.subr.mxu0 0.0
      %536 = vmatpush1.msra.mxu0 0.0
      %537 = vmatprep.subr.mxu0 0.0
      %538 = vmatpush1.msra.mxu0 0.0
      %539 = vmatprep.subr.mxu0 0.0
      %540 = vmatpush1.msra.mxu0 0.0
      %541 = vmatprep.subr.mxu0 0.0
      %542 = vmatpush1.msra.mxu0 0.0
      %543 = vmatprep.subr.mxu0 0.0
      %544 = vmatpush1.msra.mxu0 0.0
      %545 = vmatprep.subr.mxu0 0.0
      %546 = vmatpush1.msra.mxu0 0.0
      %547 = vmatprep.subr.mxu0 0.0
      %548 = vmatpush1.msra.mxu0 0.0
      %549 = vmatprep.subr.mxu0 0.0
      %550 = vmatpush1.msra.mxu0 0.0
      %551 = vmatprep.subr.mxu0 0.0
      %552 = vmatpush1.msra.mxu0 0.0
      %553 = vmatprep.subr.mxu0 0.0
      %554 = vmatpush1.msra.mxu0 0.0
      %555 = vmatprep.subr.mxu0 0.0
      %556 = vmatpush1.msra.mxu0 0.0
      %557 = vmatprep.subr.mxu0 0.0
      %558 = vmatpush1.msra.mxu0 0.0
      %559 = vmatprep.subr.mxu0 0.0
      %560 = vmatpush1.msra.mxu0 0.0
      %561 = vmatprep.subr.mxu0 0.0
      %562 = vmatpush1.msra.mxu0 0.0
      %563 = vmatprep.subr.mxu0 0.0
      %564 = vmatpush1.msra.mxu0 0.0
      %565 = vmatprep.mubr.f32.mxu0 0.0
      %566 = vmatmul.mubr.f32.gmra.mrb[0].mxu0 %v496
      %v567 = vpop.f32.mrb[0].mxu0
      %v568 = vadd.f32 %v492, %v567
      %v569 = vpop.f32.mrb[0].mxu0
      %570 = vmatprep.mubr.f32.mxu0 0.0
      %571 = vmatmul.mubr.f32.gmra.mrb[0].mxu0 %v499
      %v572 = vpop.f32.mrb[0].mxu0
      %v573 = vadd.f32 %v492, %v572
      %v574 = vpop.f32.mrb[0].mxu0
      %575 = vdwg.mxu0
      %vm576 = vcmask 130048
      %577 = vst.msk [vmem:[%s253] sm:$0xff] %vm576, %v568
      %578 = vst.msk [vmem:[%s253 + $0x8] sm:$0xff] %vm576, %v573
      %s579 = smul.u32 2, %s17
      %p580 = scmp.lt.s32.totalorder %s579, 3
      %s581 = scalar_select %p580, %s579, 3
      %s582 = smul.addr %s581, 8
      %s583 = scalar_lea.vmem %s6, %s582
      // Predicated region
      $region45: #{tpu_custom_call.1} parent=43 // pred_check
        %p584 = pneg %p166
      $region46: #{tpu_custom_call.1} parent=43 // pred_check_branch
        %586 = sbr.rel (%p584) target = $region48
      $region47: #{tpu_custom_call.1} parent=43 // pred_region
        %s587 = smul.u32 2, %s17
      $region48: #{tpu_custom_call.1} parent=43 // pred_fallthru
        _
    $region44: #{tpu_custom_call.1} parent=5 // pred_fallthru
      _
    %p588 = scmp.le.s32.totalorder 2, %s12
    // Predicated region
    $region49: #{tpu_custom_call.1} parent=5 // pred_check
      %p589 = pneg %p588
    $region50: #{tpu_custom_call.1} parent=5 // pred_check_branch
      %591 = sbr.rel (%p589) target = $region52
    $region51: #{tpu_custom_call.1} parent=5 // pred_region
      %s592 = ssub.s32 %s12, 2
      // Predicated region
      $region53: #{tpu_custom_call.1} parent=51 // pred_check
        %p593 = pneg %p172
      $region54: #{tpu_custom_call.1} parent=51 // pred_check_branch
        %595 = sbr.rel (%p593) target = $region56
      $region55: #{tpu_custom_call.1} parent=51 // pred_region
        %s596 = smul.u32 2, %s18
        %p597 = scmp.lt.s32.totalorder %s596, 3
        %s598 = scalar_select %p597, %s596, 3
        %s599 = smul.addr %s598, 8
        %s600 = scalar_lea.vmem %s6, %s599
      $region56: #{tpu_custom_call.1} parent=51 // pred_fallthru
        _
    $region52: #{tpu_custom_call.1} parent=5 // pred_fallthru
      _
  $region6: #{tpu_custom_call.1} parent=0 // loop_footer
    %s16 = sadd.s32 1, %s12
  $region7: #{tpu_custom_call.1} parent=0 // loop_footer_branch
    %11 = sbr.rel target = $region3
  $region8: #{tpu_custom_call.1} parent=0 // loop_exit
    _

</llo_original>
